<compile_context>
chip_gen: v5e
topology: v5e:2x2
jax: 0.10.0
libtpu: 0.0.40
codegen_flags: <defaults>
</compile_context>

<pallas_src>
import jax
import jax.numpy as jnp
from jax import lax
from jax.experimental import pallas as pl
from jax.experimental.pallas import tpu as pltpu


def fused_conv_bn_relu_kernel(p_ref, w_ref, g_ref, b_ref, o_ref):
    """Fused conv3x3 (as im2col matmul) + training-mode BatchNorm2d + ReLU.

    p_ref: (9*Cin, N*H*W) bf16  im2col patches, channels-first (lane-dense, lanes=N*H*W)
    w_ref: (Cout, 9*Cin)  bf16  conv weights, columns ordered (kh, kw, ci)
    g_ref: (Cout, 1)      f32   BN gamma
    b_ref: (Cout, 1)      f32   BN beta
    o_ref: (N, Cout, H*W) f32   NCHW output with HW flattened (lane-dense stores)
    """
    n_img, c_out, hw = o_ref.shape
    eps = 1e-5

    # 3x3 conv == one K=36 matmul on the MXU, bf16 inputs, f32 accumulate.
    y = jnp.dot(w_ref[...], p_ref[...],
                preferred_element_type=jnp.float32)            # (Cout, N*H*W)

    # Training-mode BatchNorm2d: biased batch stats over (N, H, W) == lane axis here.
    mean = jnp.mean(y, axis=1, keepdims=True)                  # (Cout, 1)
    var = jnp.mean(jnp.square(y - mean), axis=1, keepdims=True)  # biased, as PyTorch BN
    scale = lax.rsqrt(var + eps) * g_ref[...]                  # (Cout, 1)
    out = jnp.maximum((y - mean) * scale + b_ref[...], 0.0)    # normalize + affine + ReLU

    # Lane-dense (Cout, HW) slab per image; output is already NCHW-ordered.
    for n in range(n_img):
        o_ref[n] = out[:, n * hw:(n + 1) * hw].astype(o_ref.dtype)
    # TODO(synk): BatchNorm2d running_mean / running_var buffer updates are not modeled
    # (they do not affect the training-mode forward output).


def feature_block(x_nchw, w_oihw, bias, gamma, beta):
    """Forward pass of FeatureBlock. x_nchw: (N, Cin, H, W) f32 -> (N, Cout, H, W) f32."""
    del bias  # Conv bias cancels exactly under training-mode BN (see header comment).
    N, Cin, H, W = x_nchw.shape
    Cout = w_oihw.shape[0]
    HW = H * W
    K = 9 * Cin

    # --- wrapper-side layout glue (im2col); XLA fuses this into one tiny fusion ---
    x_pad = jnp.pad(x_nchw, ((0, 0), (0, 0), (1, 1), (1, 1)))       # SAME pad for 3x3
    taps = [x_pad[:, :, kh:kh + H, kw:kw + W]                       # each (N, Cin, H, W)
            for kh in range(3) for kw in range(3)]
    patches = jnp.stack(taps, axis=0)                               # (9, N, Cin, H, W)
    patches_t = jnp.transpose(patches, (0, 2, 1, 3, 4)).reshape(K, N * HW)
    patches_t = patches_t.astype(jnp.bfloat16)                      # MXU-native inputs

    # weight row c: [(kh, kw, ci)] to match the patch row ordering above.
    w_mat = jnp.transpose(w_oihw, (0, 2, 3, 1)).reshape(Cout, K).astype(jnp.bfloat16)

    g2 = gamma.reshape(Cout, 1).astype(jnp.float32)
    b2 = beta.reshape(Cout, 1).astype(jnp.float32)

    out = pl.pallas_call(
        fused_conv_bn_relu_kernel,
        out_shape=jax.ShapeDtypeStruct((N, Cout, HW), jnp.float32),
        grid=(1,),
        in_specs=[
            pl.BlockSpec((K, N * HW), lambda i: (0, 0)),
            pl.BlockSpec((Cout, K), lambda i: (0, 0)),
            pl.BlockSpec((Cout, 1), lambda i: (0, 0)),
            pl.BlockSpec((Cout, 1), lambda i: (0, 0)),
        ],
        out_specs=pl.BlockSpec((N, Cout, HW), lambda i: (0, 0, 0)),
        compiler_params=pltpu.CompilerParams(dimension_semantics=("arbitrary",)),
    )(patches_t, w_mat, g2, b2)

    return out.reshape(N, Cout, H, W)   # contiguous reshape: free, no transpose kernel


def reference(x_nchw, w_oihw, bias, gamma, beta, *, round_inputs_to_bf16=False):
    """Pure-JAX mirror of the PyTorch module (training-mode BN), including conv bias."""
    if round_inputs_to_bf16:
        # Match the kernel's single-pass MXU precision (bf16 inputs, f32 accumulate).
        x_nchw = x_nchw.astype(jnp.bfloat16).astype(jnp.float32)
        w_oihw = w_oihw.astype(jnp.bfloat16).astype(jnp.float32)
    y = lax.conv_general_dilated(
        x_nchw, w_oihw, window_strides=(1, 1), padding="SAME",
        dimension_numbers=("NCHW", "OIHW", "NCHW"),
        precision=lax.Precision.HIGHEST)
    y = y + bias[None, :, None, None]
    mean = jnp.mean(y, axis=(0, 2, 3), keepdims=True)
    var = jnp.mean((y - mean) ** 2, axis=(0, 2, 3), keepdims=True)
    yn = (y - mean) / jnp.sqrt(var + 1e-5)
    yn = yn * gamma[None, :, None, None] + beta[None, :, None, None]
    return jnp.maximum(yn, 0.0)


if __name__ == "__main__":
    # Shapes implied by FeatureBlock(channels=4, out_channels=64): x is NCHW.
    N, Cin, H, W = 2, 4, 16, 16
    Cout = 64

    key = jax.random.PRNGKey(0)
    kx, kw, kb, kg, kbe = jax.random.split(key, 5)

    x = jax.random.normal(kx, (N, Cin, H, W), dtype=jnp.float32)
    w = 0.1 * jax.random.normal(kw, (Cout, Cin, 3, 3), dtype=jnp.float32)
    b = 0.1 * jax.random.normal(kb, (Cout,), dtype=jnp.float32)
    gamma = 1.0 + 0.1 * jax.random.normal(kg, (Cout,), dtype=jnp.float32)
    beta = 0.1 * jax.random.normal(kbe, (Cout,), dtype=jnp.float32)

    out = jax.jit(feature_block)(x, w, b, gamma, beta)
    out = jax.block_until_ready(out)
    assert out.shape == (N, Cout, H, W)

    # Structural check at matched (bf16-input / f32-accumulate) precision: verifies the
    # im2col conv, biased batch stats, eps, gamma/beta, ReLU and the bias cancellation.
    ref_bf16 = reference(x, w, b, gamma, beta, round_inputs_to_bf16=True)
    assert jnp.allclose(out, ref_bf16, atol=1e-3, rtol=1e-3), \
        float(jnp.max(jnp.abs(out - ref_bf16)))

    # Sanity check vs the exact-f32 forward; residual deviation is bounded by the
    # intentional bf16 rounding of the MXU inputs (DEFAULT precision, per perf guidance).
    ref_f32 = reference(x, w, b, gamma, beta)
    assert jnp.allclose(out, ref_f32, atol=1e-1, rtol=1e-1), \
        float(jnp.max(jnp.abs(out - ref_f32)))

    print("KERNEL_OK")
</pallas_src>

<mosaic_0001>
module attributes {stable_mosaic.version = 11 : i64} {
  func.func @fused_conv_bn_relu_kernel(%arg0: i32, %arg1: memref<36x512xbf16, #tpu.memory_space<vmem>>, %arg2: memref<64x36xbf16, #tpu.memory_space<vmem>>, %arg3: memref<64x1xf32, #tpu.memory_space<vmem>>, %arg4: memref<64x1xf32, #tpu.memory_space<vmem>>, %arg5: memref<2x64x256xf32, #tpu.memory_space<vmem>>) attributes {dimension_semantics = [#tpu.dimension_semantics<arbitrary>], iteration_bounds = array<i64: 1>, scalar_prefetch = 0 : i64, scratch_operands = 0 : i64, tpu.core_type = #tpu.core_type<tc>, window_params = [{pipeline_mode = #tpu.pipeline_mode<synchronous>, transform_indices = @transform_0, window_bounds = array<i64: 36, 512>}, {pipeline_mode = #tpu.pipeline_mode<synchronous>, transform_indices = @transform_1, window_bounds = array<i64: 64, 36>}, {pipeline_mode = #tpu.pipeline_mode<synchronous>, transform_indices = @transform_2, window_bounds = array<i64: 64, 1>}, {pipeline_mode = #tpu.pipeline_mode<synchronous>, transform_indices = @transform_3, window_bounds = array<i64: 64, 1>}, {pipeline_mode = #tpu.pipeline_mode<synchronous>, transform_indices = @transform_4, window_bounds = array<i64: 2, 64, 256>}]} {
    %c0 = arith.constant 0 : index
    %c0_0 = arith.constant 0 : index
    %0 = vector.load %arg2[%c0, %c0_0] : memref<64x36xbf16, #tpu.memory_space<vmem>>, vector<64x36xbf16>
    %c0_1 = arith.constant 0 : index
    %c0_2 = arith.constant 0 : index
    %1 = vector.load %arg1[%c0_1, %c0_2] : memref<36x512xbf16, #tpu.memory_space<vmem>>, vector<36x512xbf16>
    %cst = arith.constant dense<0.000000e+00> : vector<64x512xf32>
    %2 = tpu.matmul %0, %1, %cst {dimension_numbers = #tpu.dot_dimension_numbers<[1], [0], [0], [1], [0, 0, 1, 1], [], []>} : vector<64x36xbf16>, vector<36x512xbf16>, vector<64x512xf32> -> vector<64x512xf32>
    %cst_3 = arith.constant dense<0.000000e+00> : vector<64xf32>
    %3 = vector.multi_reduction <add>, %2, %cst_3 [1] : vector<64x512xf32> to vector<64xf32>
    %4 = vector.shape_cast %3 : vector<64xf32> to vector<64x1xf32>
    %cst_4 = arith.constant 5.120000e+02 : f32
    %5 = vector.broadcast %cst_4 : f32 to vector<64x1xf32>
    %6 = arith.divf %4, %5 : vector<64x1xf32>
    %7 = vector.broadcast %6 : vector<64x1xf32> to vector<64x512xf32>
    %8 = arith.subf %2, %7 : vector<64x512xf32>
    %9 = arith.mulf %8, %8 : vector<64x512xf32>
    %cst_5 = arith.constant dense<0.000000e+00> : vector<64xf32>
    %10 = vector.multi_reduction <add>, %9, %cst_5 [1] : vector<64x512xf32> to vector<64xf32>
    %11 = vector.shape_cast %10 : vector<64xf32> to vector<64x1xf32>
    %cst_6 = arith.constant 5.120000e+02 : f32
    %12 = vector.broadcast %cst_6 : f32 to vector<64x1xf32>
    %13 = arith.divf %11, %12 : vector<64x1xf32>
    %cst_7 = arith.constant 9.99999974E-6 : f32
    %14 = vector.broadcast %cst_7 : f32 to vector<64x1xf32>
    %15 = arith.addf %13, %14 : vector<64x1xf32>
    %16 = math.rsqrt %15 : vector<64x1xf32>
    %c0_8 = arith.constant 0 : index
    %c0_9 = arith.constant 0 : index
    %17 = vector.load %arg3[%c0_8, %c0_9] : memref<64x1xf32, #tpu.memory_space<vmem>>, vector<64x1xf32>
    %18 = arith.mulf %16, %17 : vector<64x1xf32>
    %19 = vector.broadcast %6 : vector<64x1xf32> to vector<64x512xf32>
    %20 = arith.subf %2, %19 : vector<64x512xf32>
    %21 = vector.broadcast %18 : vector<64x1xf32> to vector<64x512xf32>
    %22 = arith.mulf %20, %21 : vector<64x512xf32>
    %c0_10 = arith.constant 0 : index
    %c0_11 = arith.constant 0 : index
    %23 = vector.load %arg4[%c0_10, %c0_11] : memref<64x1xf32, #tpu.memory_space<vmem>>, vector<64x1xf32>
    %24 = vector.broadcast %23 : vector<64x1xf32> to vector<64x512xf32>
    %25 = arith.addf %22, %24 : vector<64x512xf32>
    %cst_12 = arith.constant 0.000000e+00 : f32
    %26 = vector.broadcast %cst_12 : f32 to vector<64x512xf32>
    %27 = arith.maximumf %25, %26 : vector<64x512xf32>
    %28 = vector.extract_strided_slice %27 {offsets = [0, 0], sizes = [64, 256], strides = [1, 1]} : vector<64x512xf32> to vector<64x256xf32>
    %c0_13 = arith.constant 0 : index
    %c0_14 = arith.constant 0 : index
    %c0_15 = arith.constant 0 : index
    %29 = vector.load %arg5[%c0_13, %c0_14, %c0_15] : memref<2x64x256xf32, #tpu.memory_space<vmem>>, vector<1x64x256xf32>
    %30 = vector.shape_cast %29 : vector<1x64x256xf32> to vector<64x256xf32>
    %31 = vector.shape_cast %28 : vector<64x256xf32> to vector<1x64x256xf32>
    tpu.vector_store %arg5[%c0_13, %c0_14, %c0_15], %31 {strides = array<i32>} : memref<2x64x256xf32, #tpu.memory_space<vmem>>, vector<1x64x256xf32>,
    %32 = vector.extract_strided_slice %27 {offsets = [0, 256], sizes = [64, 256], strides = [1, 1]} : vector<64x512xf32> to vector<64x256xf32>
    %c1 = arith.constant 1 : index
    %c0_16 = arith.constant 0 : index
    %c0_17 = arith.constant 0 : index
    %33 = vector.load %arg5[%c1, %c0_16, %c0_17] : memref<2x64x256xf32, #tpu.memory_space<vmem>>, vector<1x64x256xf32>
    %34 = vector.shape_cast %33 : vector<1x64x256xf32> to vector<64x256xf32>
    %35 = vector.shape_cast %32 : vector<64x256xf32> to vector<1x64x256xf32>
    tpu.vector_store %arg5[%c1, %c0_16, %c0_17], %35 {strides = array<i32>} : memref<2x64x256xf32, #tpu.memory_space<vmem>>, vector<1x64x256xf32>,
    return
  }
  func.func @transform_0(%arg0: i32) -> (i32, i32) {
    %c0_i32 = arith.constant 0 : i32
    %c0_i32_0 = arith.constant 0 : i32
    %c0_i32_1 = arith.constant 0 : i32
    return %c0_i32, %c0_i32_0 : i32, i32
  }
  func.func @transform_1(%arg0: i32) -> (i32, i32) {
    %c0_i32 = arith.constant 0 : i32
    %c0_i32_0 = arith.constant 0 : i32
    %c0_i32_1 = arith.constant 0 : i32
    return %c0_i32, %c0_i32_0 : i32, i32
  }
  func.func @transform_2(%arg0: i32) -> (i32, i32) {
    %c0_i32 = arith.constant 0 : i32
    %c0_i32_0 = arith.constant 0 : i32
    %c0_i32_1 = arith.constant 0 : i32
    return %c0_i32, %c0_i32_0 : i32, i32
  }
  func.func @transform_3(%arg0: i32) -> (i32, i32) {
    %c0_i32 = arith.constant 0 : i32
    %c0_i32_0 = arith.constant 0 : i32
    %c0_i32_1 = arith.constant 0 : i32
    return %c0_i32, %c0_i32_0 : i32, i32
  }
  func.func @transform_4(%arg0: i32) -> (i32, i32, i32) {
    %c0_i32 = arith.constant 0 : i32
    %c0_i32_0 = arith.constant 0 : i32
    %c0_i32_1 = arith.constant 0 : i32
    %c0_i32_2 = arith.constant 0 : i32
    return %c0_i32, %c0_i32_0, %c0_i32_1 : i32, i32, i32
  }
}

</mosaic_0001>

<llo_original>
// kernel: feature_block.1
$region0: #{feature_block.1}
  #allocation0 [shape = 'u32[]', space=smem, size = 0x4, offset = 0x4, fixed_abs, tag = 'smem constant byte address 0x4 - core index']
  #allocation1 [shape = 'u32[72,128]{1,0:T(1,128)}', space=vmem, size = 0x9000, scoped, tag = 'internal scratch']
  %s0 = inlined_call_operand.vmem [shape: bf16[36,512], index: 0, kind: input, shape index: {}]
  %s1 = inlined_call_operand.vmem [shape: bf16[64,36], index: 1, kind: input, shape index: {}]
  %s2 = inlined_call_operand.vmem [shape: f32[64,1], index: 2, kind: input, shape index: {}]
  %s3 = inlined_call_operand.vmem [shape: f32[64,1], index: 3, kind: input, shape index: {}]
  %s4 = inlined_call_operand.vmem [shape: f32[2,64,256], index: 4, kind: output, shape index: {}]
  %s5 = sld [smem:[#allocation0]]
  $region26: #{feature_block.1} parent=0
    _
  %s7 = ssub.s32 1, %s5
  %s8 = scalar_select 0, %s7, %s5
  // Predicated region
  $region2: #{feature_block.1} parent=0 // pred_check
    _
  $region3: #{feature_block.1} parent=0 // pred_check_branch
    %10 = sbr.rel (0) target = $region5
  $region4: #{feature_block.1} parent=0 // pred_region
    _
  $region5: #{feature_block.1} parent=0 // pred_fallthru
    _
  // Predicated region
  $region6: #{feature_block.1} parent=0 // pred_check
    _
  $region7: #{feature_block.1} parent=0 // pred_check_branch
    %12 = sbr.rel (0) target = $region9
  $region8: #{feature_block.1} parent=0 // pred_region
    _
  $region9: #{feature_block.1} parent=0 // pred_fallthru
    _
  // Predicated region
  $region10: #{feature_block.1} parent=0 // pred_check
    _
  $region11: #{feature_block.1} parent=0 // pred_check_branch
    %14 = sbr.rel (0) target = $region13
  $region12: #{feature_block.1} parent=0 // pred_region
    _
  $region13: #{feature_block.1} parent=0 // pred_fallthru
    _
  // Predicated region
  $region14: #{feature_block.1} parent=0 // pred_check
    _
  $region15: #{feature_block.1} parent=0 // pred_check_branch
    %16 = sbr.rel (0) target = $region17
  $region16: #{feature_block.1} parent=0 // pred_region
    _
  $region17: #{feature_block.1} parent=0 // pred_fallthru
    _
  %v18 = vld [vmem:[%s1] sm:$0xf]
  %v19 = vld [vmem:[%s1 + $0x4] sm:$0xf]
  %v20 = vld [vmem:[%s1 + $0x8] sm:$0xf]
  %v21 = vld [vmem:[%s1 + $0xc] sm:$0xf]
  %v22 = vld [vmem:[%s1 + $0x10] sm:$0xf]
  %v23 = vld [vmem:[%s1 + $0x14] sm:$0xf]
  %v24 = vld [vmem:[%s1 + $0x18] sm:$0xf]
  %v25 = vld [vmem:[%s1 + $0x1c] sm:$0xf]
  %v26 = vld [vmem:[%s0] sm:$0xff]
  %v27 = vld [vmem:[%s0 + $0x8] sm:$0xff]
  %v28 = vld [vmem:[%s0 + $0x10] sm:$0xff]
  %v29 = vld [vmem:[%s0 + $0x18] sm:$0xff]
  %v30 = vld [vmem:[%s0 + $0x20] sm:$0xff]
  %v31 = vld [vmem:[%s0 + $0x28] sm:$0xff]
  %v32 = vld [vmem:[%s0 + $0x30] sm:$0xff]
  %v33 = vld [vmem:[%s0 + $0x38] sm:$0xff]
  %v34 = vld [vmem:[%s0 + $0x40] sm:$0x33]
  %v35 = vld [vmem:[%s0 + $0x48] sm:$0x33]
  %v44 = vunpack.c.l.b16 %v18
  %v45 = vunpack.c.l.b16 %v19
  %v46 = vunpack.c.l.b16 %v20
  %v47 = vunpack.c.l.b16 %v21
  %v48 = vunpack.c.l.b16 %v22
  %v49 = vunpack.c.l.b16 %v23
  %v50 = vunpack.c.l.b16 %v24
  %v51 = vunpack.c.l.b16 %v25
  %v52 = vpack.c.b16 %v45, %v44
  %v53 = vpack.c.b16 %v47, %v46
  %v54 = vpack.c.b16 %v49, %v48
  %v55 = vpack.c.b16 %v51, %v50
  %v66 = vunpack.c.l.b16 %v26
  %v67 = vunpack.c.h.b16 %v26
  %v68 = vunpack.c.l.b16 %v27
  %v69 = vunpack.c.h.b16 %v27
  %v70 = vunpack.c.l.b16 %v28
  %v71 = vunpack.c.h.b16 %v28
  %v72 = vunpack.c.l.b16 %v29
  %v73 = vunpack.c.h.b16 %v29
  %v74 = vunpack.c.l.b16 %v30
  %v75 = vunpack.c.h.b16 %v30
  %v76 = vunpack.c.l.b16 %v31
  %v77 = vunpack.c.h.b16 %v31
  %v78 = vunpack.c.l.b16 %v32
  %v79 = vunpack.c.h.b16 %v32
  %v80 = vunpack.c.l.b16 %v33
  %v81 = vunpack.c.h.b16 %v33
  %v82 = vunpack.c.l.b16 %v34
  %v83 = vunpack.c.h.b16 %v34
  %v84 = vunpack.c.l.b16 %v35
  %v85 = vunpack.c.h.b16 %v35
  %v86 = vpack.c.b16 %v70, %v66
  %v87 = vpack.c.b16 %v71, %v67
  %v88 = vpack.c.b16 %v72, %v68
  %v89 = vpack.c.b16 %v73, %v69
  %v90 = vpack.c.b16 %v78, %v74
  %v91 = vpack.c.b16 %v79, %v75
  %v92 = vpack.c.b16 %v80, %v76
  %v93 = vpack.c.b16 %v81, %v77
  %v94 = vpack.c.b16 %v82, %v82
  %v95 = vpack.c.b16 %v83, %v83
  %v96 = vpack.c.b16 %v84, %v84
  %v97 = vpack.c.b16 %v85, %v85
  %vm106 = vcmask 293888
  %v108 = vsel %vm106, %v52, 0
  %v111 = vsel %vm106, %v53, 0
  %v114 = vsel %vm106, %v54, 0
  %v117 = vsel %vm106, %v55, 0
  %vm119 = vcmask 1041408
  %v121 = vsel %vm119, %v94, 0
  %v124 = vsel %vm119, %v95, 0
  %v127 = vsel %vm119, %v96, 0
  %v130 = vsel %vm119, %v97, 0
  %132 = vmatpush.bf16.msra.mxu0 0
  %133 = vmatpush.bf16.msra.mxu0 0
  %134 = vmatpush.bf16.msra.mxu0 0
  %135 = vmatpush.bf16.msra.mxu0 0
  %136 = vmatpush.bf16.msra.mxu0 0
  %137 = vmatpush.bf16.msra.mxu0 %v121
  %138 = vmatpush.bf16.msra.mxu0 %v90
  %139 = vmatpush.bf16.msra.mxu0 %v86
  %140 = vmatmul.bf16.gmra.mxu0 %v108
  %v141 = vpop.f32.mrf.mxu0
  %v142 = vadd.f32 0.0, %v141
  %v143 = vpop.f32.mrf.mxu0
  %v144 = vadd.f32 0.0, %v143
  %145 = vmatmul.bf16.gmra.mxu0 %v111
  %v146 = vpop.f32.mrf.mxu0
  %v147 = vadd.f32 0.0, %v146
  %v148 = vpop.f32.mrf.mxu0
  %v149 = vadd.f32 0.0, %v148
  %150 = vmatmul.bf16.gmra.mxu0 %v114
  %v151 = vpop.f32.mrf.mxu0
  %v152 = vadd.f32 0.0, %v151
  %v153 = vpop.f32.mrf.mxu0
  %v154 = vadd.f32 0.0, %v153
  %155 = vmatmul.bf16.gmra.mxu0 %v117
  %v156 = vpop.f32.mrf.mxu0
  %v157 = vadd.f32 0.0, %v156
  %v158 = vpop.f32.mrf.mxu0
  %v159 = vadd.f32 0.0, %v158
  %160 = vdwg.mxu0
  %161 = vmatpush.bf16.msra.mxu0 0
  %162 = vmatpush.bf16.msra.mxu0 0
  %163 = vmatpush.bf16.msra.mxu0 0
  %164 = vmatpush.bf16.msra.mxu0 0
  %165 = vmatpush.bf16.msra.mxu0 0
  %166 = vmatpush.bf16.msra.mxu0 %v124
  %167 = vmatpush.bf16.msra.mxu0 %v91
  %168 = vmatpush.bf16.msra.mxu0 %v87
  %169 = vmatmul.bf16.gmra.mxu0 %v108
  %v170 = vpop.f32.mrf.mxu0
  %v171 = vadd.f32 0.0, %v170
  %v172 = vpop.f32.mrf.mxu0
  %v173 = vadd.f32 0.0, %v172
  %174 = vmatmul.bf16.gmra.mxu0 %v111
  %v175 = vpop.f32.mrf.mxu0
  %v176 = vadd.f32 0.0, %v175
  %v177 = vpop.f32.mrf.mxu0
  %v178 = vadd.f32 0.0, %v177
  %179 = vmatmul.bf16.gmra.mxu0 %v114
  %v180 = vpop.f32.mrf.mxu0
  %v181 = vadd.f32 0.0, %v180
  %v182 = vpop.f32.mrf.mxu0
  %v183 = vadd.f32 0.0, %v182
  %184 = vmatmul.bf16.gmra.mxu0 %v117
  %v185 = vpop.f32.mrf.mxu0
  %v186 = vadd.f32 0.0, %v185
  %v187 = vpop.f32.mrf.mxu0
  %v188 = vadd.f32 0.0, %v187
  %189 = vdwg.mxu0
  %190 = vmatpush.bf16.msra.mxu0 0
  %191 = vmatpush.bf16.msra.mxu0 0
  %192 = vmatpush.bf16.msra.mxu0 0
  %193 = vmatpush.bf16.msra.mxu0 0
  %194 = vmatpush.bf16.msra.mxu0 0
  %195 = vmatpush.bf16.msra.mxu0 %v127
  %196 = vmatpush.bf16.msra.mxu0 %v92
  %197 = vmatpush.bf16.msra.mxu0 %v88
  %198 = vmatmul.bf16.gmra.mxu0 %v108
  %v199 = vpop.f32.mrf.mxu0
  %v200 = vadd.f32 0.0, %v199
  %v201 = vpop.f32.mrf.mxu0
  %v202 = vadd.f32 0.0, %v201
  %203 = vmatmul.bf16.gmra.mxu0 %v111
  %v204 = vpop.f32.mrf.mxu0
  %v205 = vadd.f32 0.0, %v204
  %v206 = vpop.f32.mrf.mxu0
  %v207 = vadd.f32 0.0, %v206
  %208 = vmatmul.bf16.gmra.mxu0 %v114
  %v209 = vpop.f32.mrf.mxu0
  %v210 = vadd.f32 0.0, %v209
  %v211 = vpop.f32.mrf.mxu0
  %v212 = vadd.f32 0.0, %v211
  %213 = vmatmul.bf16.gmra.mxu0 %v117
  %v214 = vpop.f32.mrf.mxu0
  %v215 = vadd.f32 0.0, %v214
  %v216 = vpop.f32.mrf.mxu0
  %v217 = vadd.f32 0.0, %v216
  %218 = vdwg.mxu0
  %219 = vmatpush.bf16.msra.mxu0 0
  %220 = vmatpush.bf16.msra.mxu0 0
  %221 = vmatpush.bf16.msra.mxu0 0
  %222 = vmatpush.bf16.msra.mxu0 0
  %223 = vmatpush.bf16.msra.mxu0 0
  %224 = vmatpush.bf16.msra.mxu0 %v130
  %225 = vmatpush.bf16.msra.mxu0 %v93
  %226 = vmatpush.bf16.msra.mxu0 %v89
  %227 = vmatmul.bf16.gmra.mxu0 %v108
  %v228 = vpop.f32.mrf.mxu0
  %v229 = vadd.f32 0.0, %v228
  %v230 = vpop.f32.mrf.mxu0
  %v231 = vadd.f32 0.0, %v230
  %232 = vmatmul.bf16.gmra.mxu0 %v111
  %v233 = vpop.f32.mrf.mxu0
  %v234 = vadd.f32 0.0, %v233
  %v235 = vpop.f32.mrf.mxu0
  %v236 = vadd.f32 0.0, %v235
  %237 = vmatmul.bf16.gmra.mxu0 %v114
  %v238 = vpop.f32.mrf.mxu0
  %v239 = vadd.f32 0.0, %v238
  %v240 = vpop.f32.mrf.mxu0
  %v241 = vadd.f32 0.0, %v240
  %242 = vmatmul.bf16.gmra.mxu0 %v117
  %v243 = vpop.f32.mrf.mxu0
  %v244 = vadd.f32 0.0, %v243
  %v245 = vpop.f32.mrf.mxu0
  %v246 = vadd.f32 0.0, %v245
  %247 = vdwg.mxu0
  %v248 = vadd.f32 %v142, %v171
  %v249 = vadd.f32 %v248, %v200
  %v250 = vadd.f32 %v249, %v229
  %251 = vadd.xlane.f32.xlu0 %v250
  %v252 = vpop.xlane.xlu0 %251
  %v253 = vadd.f32 %v144, %v173
  %v254 = vadd.f32 %v253, %v202
  %v255 = vadd.f32 %v254, %v231
  %256 = vadd.xlane.f32.xlu0 %v255
  %v257 = vpop.xlane.xlu0 %256
  %v258 = vadd.f32 %v147, %v176
  %v259 = vadd.f32 %v258, %v205
  %v260 = vadd.f32 %v259, %v234
  %261 = vadd.xlane.f32.xlu0 %v260
  %v262 = vpop.xlane.xlu0 %261
  %v263 = vadd.f32 %v149, %v178
  %v264 = vadd.f32 %v263, %v207
  %v265 = vadd.f32 %v264, %v236
  %266 = vadd.xlane.f32.xlu0 %v265
  %v267 = vpop.xlane.xlu0 %266
  %v268 = vadd.f32 %v152, %v181
  %v269 = vadd.f32 %v268, %v210
  %v270 = vadd.f32 %v269, %v239
  %271 = vadd.xlane.f32.xlu0 %v270
  %v272 = vpop.xlane.xlu0 %271
  %v273 = vadd.f32 %v154, %v183
  %v274 = vadd.f32 %v273, %v212
  %v275 = vadd.f32 %v274, %v241
  %276 = vadd.xlane.f32.xlu0 %v275
  %v277 = vpop.xlane.xlu0 %276
  %v278 = vadd.f32 %v157, %v186
  %v279 = vadd.f32 %v278, %v215
  %v280 = vadd.f32 %v279, %v244
  %281 = vadd.xlane.f32.xlu0 %v280
  %v282 = vpop.xlane.xlu0 %281
  %v283 = vadd.f32 %v159, %v188
  %v284 = vadd.f32 %v283, %v217
  %v285 = vadd.f32 %v284, %v246
  %286 = vadd.xlane.f32.xlu0 %v285
  %v287 = vpop.xlane.xlu0 %286
  %v288 = vrcp.pop 512.0
  %v289 = vmul.f32 512.0, %v288
  %v290 = vsub.f32 1.0, %v289
  %v291 = vmul.f32 %v288, %v290
  %v292 = vadd.f32 %v288, %v291
  %vm293 = vweird.f32 %v288
  %v294 = vsel %vm293, %v288, %v292
  %v295 = vmul.f32 %v252, %v294
  %v296 = vmul.f32 %v257, %v294
  %v297 = vmul.f32 %v262, %v294
  %v298 = vmul.f32 %v267, %v294
  %v299 = vmul.f32 %v272, %v294
  %v300 = vmul.f32 %v277, %v294
  %v301 = vmul.f32 %v282, %v294
  %v302 = vmul.f32 %v287, %v294
  %v303 = vsub.f32 %v142, %v295
  %v304 = vsub.f32 %v171, %v295
  %v305 = vsub.f32 %v200, %v295
  %v306 = vsub.f32 %v229, %v295
  %v307 = vsub.f32 %v144, %v296
  %v308 = vsub.f32 %v173, %v296
  %v309 = vsub.f32 %v202, %v296
  %v310 = vsub.f32 %v231, %v296
  %v311 = vsub.f32 %v147, %v297
  %v312 = vsub.f32 %v176, %v297
  %v313 = vsub.f32 %v205, %v297
  %v314 = vsub.f32 %v234, %v297
  %v315 = vsub.f32 %v149, %v298
  %v316 = vsub.f32 %v178, %v298
  %v317 = vsub.f32 %v207, %v298
  %v318 = vsub.f32 %v236, %v298
  %v319 = vsub.f32 %v152, %v299
  %v320 = vsub.f32 %v181, %v299
  %v321 = vsub.f32 %v210, %v299
  %v322 = vsub.f32 %v239, %v299
  %v323 = vsub.f32 %v154, %v300
  %v324 = vsub.f32 %v183, %v300
  %v325 = vsub.f32 %v212, %v300
  %v326 = vsub.f32 %v241, %v300
  %v327 = vsub.f32 %v157, %v301
  %v328 = vsub.f32 %v186, %v301
  %v329 = vsub.f32 %v215, %v301
  %v330 = vsub.f32 %v244, %v301
  %v331 = vsub.f32 %v159, %v302
  %v332 = vsub.f32 %v188, %v302
  %v333 = vsub.f32 %v217, %v302
  %v334 = vsub.f32 %v246, %v302
  %v335 = vmul.f32 %v303, %v303
  %v336 = vmul.f32 %v304, %v304
  %v337 = vmul.f32 %v305, %v305
  %v338 = vmul.f32 %v306, %v306
  %v339 = vmul.f32 %v307, %v307
  %v340 = vmul.f32 %v308, %v308
  %v341 = vmul.f32 %v309, %v309
  %v342 = vmul.f32 %v310, %v310
  %v343 = vmul.f32 %v311, %v311
  %v344 = vmul.f32 %v312, %v312
  %v345 = vmul.f32 %v313, %v313
  %v346 = vmul.f32 %v314, %v314
  %v347 = vmul.f32 %v315, %v315
  %v348 = vmul.f32 %v316, %v316
  %v349 = vmul.f32 %v317, %v317
  %v350 = vmul.f32 %v318, %v318
  %v351 = vmul.f32 %v319, %v319
  %v352 = vmul.f32 %v320, %v320
  %v353 = vmul.f32 %v321, %v321
  %v354 = vmul.f32 %v322, %v322
  %v355 = vmul.f32 %v323, %v323
  %v356 = vmul.f32 %v324, %v324
  %v357 = vmul.f32 %v325, %v325
  %v358 = vmul.f32 %v326, %v326
  %v359 = vmul.f32 %v327, %v327
  %v360 = vmul.f32 %v328, %v328
  %v361 = vmul.f32 %v329, %v329
  %v362 = vmul.f32 %v330, %v330
  %v363 = vmul.f32 %v331, %v331
  %v364 = vmul.f32 %v332, %v332
  %v365 = vmul.f32 %v333, %v333
  %v366 = vmul.f32 %v334, %v334
  %v367 = vadd.f32 %v335, %v336
  %v368 = vadd.f32 %v367, %v337
  %v369 = vadd.f32 %v368, %v338
  %370 = vadd.xlane.f32.xlu0 %v369
  %v371 = vpop.xlane.xlu0 %370
  %v372 = vadd.f32 %v339, %v340
  %v373 = vadd.f32 %v372, %v341
  %v374 = vadd.f32 %v373, %v342
  %375 = vadd.xlane.f32.xlu0 %v374
  %v376 = vpop.xlane.xlu0 %375
  %v377 = vadd.f32 %v343, %v344
  %v378 = vadd.f32 %v377, %v345
  %v379 = vadd.f32 %v378, %v346
  %380 = vadd.xlane.f32.xlu0 %v379
  %v381 = vpop.xlane.xlu0 %380
  %v382 = vadd.f32 %v347, %v348
  %v383 = vadd.f32 %v382, %v349
  %v384 = vadd.f32 %v383, %v350
  %385 = vadd.xlane.f32.xlu0 %v384
  %v386 = vpop.xlane.xlu0 %385
  %v387 = vadd.f32 %v351, %v352
  %v388 = vadd.f32 %v387, %v353
  %v389 = vadd.f32 %v388, %v354
  %390 = vadd.xlane.f32.xlu0 %v389
  %v391 = vpop.xlane.xlu0 %390
  %v392 = vadd.f32 %v355, %v356
  %v393 = vadd.f32 %v392, %v357
  %v394 = vadd.f32 %v393, %v358
  %395 = vadd.xlane.f32.xlu0 %v394
  %v396 = vpop.xlane.xlu0 %395
  %v397 = vadd.f32 %v359, %v360
  %v398 = vadd.f32 %v397, %v361
  %v399 = vadd.f32 %v398, %v362
  %400 = vadd.xlane.f32.xlu0 %v399
  %v401 = vpop.xlane.xlu0 %400
  %v402 = vadd.f32 %v363, %v364
  %v403 = vadd.f32 %v402, %v365
  %v404 = vadd.f32 %v403, %v366
  %405 = vadd.xlane.f32.xlu0 %v404
  %v406 = vpop.xlane.xlu0 %405
  %v407 = vmul.f32 %v371, %v294
  %v408 = vmul.f32 %v376, %v294
  %v409 = vmul.f32 %v381, %v294
  %v410 = vmul.f32 %v386, %v294
  %v411 = vmul.f32 %v391, %v294
  %v412 = vmul.f32 %v396, %v294
  %v413 = vmul.f32 %v401, %v294
  %v414 = vmul.f32 %v406, %v294
  %v415 = vadd.f32 %v407, 1e-05
  %v416 = vadd.f32 %v408, 1e-05
  %v417 = vadd.f32 %v409, 1e-05
  %v418 = vadd.f32 %v410, 1e-05
  %v419 = vadd.f32 %v411, 1e-05
  %v420 = vadd.f32 %v412, 1e-05
  %v421 = vadd.f32 %v413, 1e-05
  %v422 = vadd.f32 %v414, 1e-05
  %v423 = vrsqrt.pop %v415
  %v424 = vmul.f32 %v423, %v415
  %v425 = vmul.f32 %v424, %v423
  %v426 = vmul.f32 0.5, %v425
  %v427 = vsub.f32 1.5, %v426
  %v428 = vmul.f32 %v423, %v427
  %vm429 = vweird.f32 %v415
  %vm430 = vweird.f32 %v423
  %vm431 = vmor %vm429, %vm430
  %v432 = vsel %vm431, %v423, %v428
  %v433 = vrsqrt.pop %v416
  %v434 = vmul.f32 %v433, %v416
  %v435 = vmul.f32 %v434, %v433
  %v436 = vmul.f32 0.5, %v435
  %v437 = vsub.f32 1.5, %v436
  %v438 = vmul.f32 %v433, %v437
  %vm439 = vweird.f32 %v416
  %vm440 = vweird.f32 %v433
  %vm441 = vmor %vm439, %vm440
  %v442 = vsel %vm441, %v433, %v438
  %v443 = vrsqrt.pop %v417
  %v444 = vmul.f32 %v443, %v417
  %v445 = vmul.f32 %v444, %v443
  %v446 = vmul.f32 0.5, %v445
  %v447 = vsub.f32 1.5, %v446
  %v448 = vmul.f32 %v443, %v447
  %vm449 = vweird.f32 %v417
  %vm450 = vweird.f32 %v443
  %vm451 = vmor %vm449, %vm450
  %v452 = vsel %vm451, %v443, %v448
  %v453 = vrsqrt.pop %v418
  %v454 = vmul.f32 %v453, %v418
  %v455 = vmul.f32 %v454, %v453
  %v456 = vmul.f32 0.5, %v455
  %v457 = vsub.f32 1.5, %v456
  %v458 = vmul.f32 %v453, %v457
  %vm459 = vweird.f32 %v418
  %vm460 = vweird.f32 %v453
  %vm461 = vmor %vm459, %vm460
  %v462 = vsel %vm461, %v453, %v458
  %v463 = vrsqrt.pop %v419
  %v464 = vmul.f32 %v463, %v419
  %v465 = vmul.f32 %v464, %v463
  %v466 = vmul.f32 0.5, %v465
  %v467 = vsub.f32 1.5, %v466
  %v468 = vmul.f32 %v463, %v467
  %vm469 = vweird.f32 %v419
  %vm470 = vweird.f32 %v463
  %vm471 = vmor %vm469, %vm470
  %v472 = vsel %vm471, %v463, %v468
  %v473 = vrsqrt.pop %v420
  %v474 = vmul.f32 %v473, %v420
  %v475 = vmul.f32 %v474, %v473
  %v476 = vmul.f32 0.5, %v475
  %v477 = vsub.f32 1.5, %v476
  %v478 = vmul.f32 %v473, %v477
  %vm479 = vweird.f32 %v420
  %vm480 = vweird.f32 %v473
  %vm481 = vmor %vm479, %vm480
  %v482 = vsel %vm481, %v473, %v478
  %v483 = vrsqrt.pop %v421
  %v484 = vmul.f32 %v483, %v421
  %v485 = vmul.f32 %v484, %v483
  %v486 = vmul.f32 0.5, %v485
  %v487 = vsub.f32 1.5, %v486
  %v488 = vmul.f32 %v483, %v487
  %vm489 = vweird.f32 %v421
  %vm490 = vweird.f32 %v483
  %vm491 = vmor %vm489, %vm490
  %v492 = vsel %vm491, %v483, %v488
  %v493 = vrsqrt.pop %v422
  %v494 = vmul.f32 %v493, %v422
  %v495 = vmul.f32 %v494, %v493
  %v496 = vmul.f32 0.5, %v495
  %v497 = vsub.f32 1.5, %v496
  %v498 = vmul.f32 %v493, %v497
  %vm499 = vweird.f32 %v422
  %vm500 = vweird.f32 %v493
  %vm501 = vmor %vm499, %vm500
  %v502 = vsel %vm501, %v493, %v498
  %v503 = vld [vmem:[%s2] sm:$0xff]
  %v504 = vld [vmem:[%s2 + $0x8] sm:$0xff]
  %v505 = vld [vmem:[%s2 + $0x10] sm:$0xff]
  %v506 = vld [vmem:[%s2 + $0x18] sm:$0xff]
  %v507 = vld [vmem:[%s2 + $0x20] sm:$0xff]
  %v508 = vld [vmem:[%s2 + $0x28] sm:$0xff]
  %v509 = vld [vmem:[%s2 + $0x30] sm:$0xff]
  %v510 = vld [vmem:[%s2 + $0x38] sm:$0xff]
  %v511 = vmul.f32 %v432, %v503
  %v512 = vmul.f32 %v442, %v504
  %v513 = vmul.f32 %v452, %v505
  %v514 = vmul.f32 %v462, %v506
  %v515 = vmul.f32 %v472, %v507
  %v516 = vmul.f32 %v482, %v508
  %v517 = vmul.f32 %v492, %v509
  %v518 = vmul.f32 %v502, %v510
  %520 = vset.pattern.permute.xlu0 0
  %521 = vperm.xlu0 %520, %v511
  %v522 = vpop.permute.xlu0 %521
  %525 = vset.pattern.permute.xlu0 0
  %526 = vperm.xlu0 %525, %v512
  %v527 = vpop.permute.xlu0 %526
  %530 = vset.pattern.permute.xlu0 0
  %531 = vperm.xlu0 %530, %v513
  %v532 = vpop.permute.xlu0 %531
  %535 = vset.pattern.permute.xlu0 0
  %536 = vperm.xlu0 %535, %v514
  %v537 = vpop.permute.xlu0 %536
  %540 = vset.pattern.permute.xlu0 0
  %541 = vperm.xlu0 %540, %v515
  %v542 = vpop.permute.xlu0 %541
  %545 = vset.pattern.permute.xlu0 0
  %546 = vperm.xlu0 %545, %v516
  %v547 = vpop.permute.xlu0 %546
  %550 = vset.pattern.permute.xlu0 0
  %551 = vperm.xlu0 %550, %v517
  %v552 = vpop.permute.xlu0 %551
  %555 = vset.pattern.permute.xlu0 0
  %556 = vperm.xlu0 %555, %v518
  %v557 = vpop.permute.xlu0 %556
  %v559 = vmul.f32 %v303, %v522
  %v560 = vmul.f32 %v304, %v522
  %v561 = vmul.f32 %v305, %v522
  %v562 = vmul.f32 %v306, %v522
  %v563 = vmul.f32 %v307, %v527
  %v564 = vmul.f32 %v308, %v527
  %v565 = vmul.f32 %v309, %v527
  %v566 = vmul.f32 %v310, %v527
  %v567 = vmul.f32 %v311, %v532
  %v568 = vmul.f32 %v312, %v532
  %v569 = vmul.f32 %v313, %v532
  %v570 = vmul.f32 %v314, %v532
  %v571 = vmul.f32 %v315, %v537
  %v572 = vmul.f32 %v316, %v537
  %v573 = vmul.f32 %v317, %v537
  %v574 = vmul.f32 %v318, %v537
  %v575 = vmul.f32 %v319, %v542
  %v576 = vmul.f32 %v320, %v542
  %v577 = vmul.f32 %v321, %v542
  %v578 = vmul.f32 %v322, %v542
  %v579 = vmul.f32 %v323, %v547
  %v580 = vmul.f32 %v324, %v547
  %v581 = vmul.f32 %v325, %v547
  %v582 = vmul.f32 %v326, %v547
  %v583 = vmul.f32 %v327, %v552
  %v584 = vmul.f32 %v328, %v552
  %v585 = vmul.f32 %v329, %v552
  %v586 = vmul.f32 %v330, %v552
  %v587 = vmul.f32 %v331, %v557
  %v588 = vmul.f32 %v332, %v557
  %v589 = vmul.f32 %v333, %v557
  %v590 = vmul.f32 %v334, %v557
  %v591 = vld [vmem:[%s3] sm:$0xff]
  %v592 = vld [vmem:[%s3 + $0x8] sm:$0xff]
  %v593 = vld [vmem:[%s3 + $0x10] sm:$0xff]
  %v594 = vld [vmem:[%s3 + $0x18] sm:$0xff]
  %v595 = vld [vmem:[%s3 + $0x20] sm:$0xff]
  %v596 = vld [vmem:[%s3 + $0x28] sm:$0xff]
  %v597 = vld [vmem:[%s3 + $0x30] sm:$0xff]
  %v598 = vld [vmem:[%s3 + $0x38] sm:$0xff]
  %600 = vset.pattern.permute.xlu0 0
  %601 = vperm.xlu0 %600, %v591
  %v602 = vpop.permute.xlu0 %601
  %605 = vset.pattern.permute.xlu0 0
  %606 = vperm.xlu0 %605, %v592
  %v607 = vpop.permute.xlu0 %606
  %610 = vset.pattern.permute.xlu0 0
  %611 = vperm.xlu0 %610, %v593
  %v612 = vpop.permute.xlu0 %611
  %615 = vset.pattern.permute.xlu0 0
  %616 = vperm.xlu0 %615, %v594
  %v617 = vpop.permute.xlu0 %616
  %620 = vset.pattern.permute.xlu0 0
  %621 = vperm.xlu0 %620, %v595
  %v622 = vpop.permute.xlu0 %621
  %625 = vset.pattern.permute.xlu0 0
  %626 = vperm.xlu0 %625, %v596
  %v627 = vpop.permute.xlu0 %626
  %630 = vset.pattern.permute.xlu0 0
  %631 = vperm.xlu0 %630, %v597
  %v632 = vpop.permute.xlu0 %631
  %635 = vset.pattern.permute.xlu0 0
  %636 = vperm.xlu0 %635, %v598
  %v637 = vpop.permute.xlu0 %636
  %v639 = vadd.f32 %v559, %v602
  %v640 = vadd.f32 %v560, %v602
  %v641 = vadd.f32 %v561, %v602
  %v642 = vadd.f32 %v562, %v602
  %v643 = vadd.f32 %v563, %v607
  %v644 = vadd.f32 %v564, %v607
  %v645 = vadd.f32 %v565, %v607
  %v646 = vadd.f32 %v566, %v607
  %v647 = vadd.f32 %v567, %v612
  %v648 = vadd.f32 %v568, %v612
  %v649 = vadd.f32 %v569, %v612
  %v650 = vadd.f32 %v570, %v612
  %v651 = vadd.f32 %v571, %v617
  %v652 = vadd.f32 %v572, %v617
  %v653 = vadd.f32 %v573, %v617
  %v654 = vadd.f32 %v574, %v617
  %v655 = vadd.f32 %v575, %v622
  %v656 = vadd.f32 %v576, %v622
  %v657 = vadd.f32 %v577, %v622
  %v658 = vadd.f32 %v578, %v622
  %v659 = vadd.f32 %v579, %v627
  %v660 = vadd.f32 %v580, %v627
  %v661 = vadd.f32 %v581, %v627
  %v662 = vadd.f32 %v582, %v627
  %v663 = vadd.f32 %v583, %v632
  %v664 = vadd.f32 %v584, %v632
  %v665 = vadd.f32 %v585, %v632
  %v666 = vadd.f32 %v586, %v632
  %v667 = vadd.f32 %v587, %v637
  %v668 = vadd.f32 %v588, %v637
  %v669 = vadd.f32 %v589, %v637
  %v670 = vadd.f32 %v590, %v637
  %v671 = vmax.f32 %v639, 0.0
  %v672 = vmax.f32 %v640, 0.0
  %v673 = vmax.f32 %v641, 0.0
  %v674 = vmax.f32 %v642, 0.0
  %v675 = vmax.f32 %v643, 0.0
  %v676 = vmax.f32 %v644, 0.0
  %v677 = vmax.f32 %v645, 0.0
  %v678 = vmax.f32 %v646, 0.0
  %v679 = vmax.f32 %v647, 0.0
  %v680 = vmax.f32 %v648, 0.0
  %v681 = vmax.f32 %v649, 0.0
  %v682 = vmax.f32 %v650, 0.0
  %v683 = vmax.f32 %v651, 0.0
  %v684 = vmax.f32 %v652, 0.0
  %v685 = vmax.f32 %v653, 0.0
  %v686 = vmax.f32 %v654, 0.0
  %v687 = vmax.f32 %v655, 0.0
  %v688 = vmax.f32 %v656, 0.0
  %v689 = vmax.f32 %v657, 0.0
  %v690 = vmax.f32 %v658, 0.0
  %v691 = vmax.f32 %v659, 0.0
  %v692 = vmax.f32 %v660, 0.0
  %v693 = vmax.f32 %v661, 0.0
  %v694 = vmax.f32 %v662, 0.0
  %v695 = vmax.f32 %v663, 0.0
  %v696 = vmax.f32 %v664, 0.0
  %v697 = vmax.f32 %v665, 0.0
  %v698 = vmax.f32 %v666, 0.0
  %v699 = vmax.f32 %v667, 0.0
  %v700 = vmax.f32 %v668, 0.0
  %v701 = vmax.f32 %v669, 0.0
  %v702 = vmax.f32 %v670, 0.0
  %703 = vst [vmem:[%s4] sm:$0xff] %v671
  %704 = vst [vmem:[%s4 + $0x8] sm:$0xff] %v672
  %705 = vst [vmem:[%s4 + $0x10] sm:$0xff] %v675
  %706 = vst [vmem:[%s4 + $0x18] sm:$0xff] %v676
  %707 = vst [vmem:[%s4 + $0x20] sm:$0xff] %v679
  %708 = vst [vmem:[%s4 + $0x28] sm:$0xff] %v680
  %709 = vst [vmem:[%s4 + $0x30] sm:$0xff] %v683
  %710 = vst [vmem:[%s4 + $0x38] sm:$0xff] %v684
  %711 = vst [vmem:[%s4 + $0x40] sm:$0xff] %v687
  %712 = vst [vmem:[%s4 + $0x48] sm:$0xff] %v688
  %713 = vst [vmem:[%s4 + $0x50] sm:$0xff] %v691
  %714 = vst [vmem:[%s4 + $0x58] sm:$0xff] %v692
  %715 = vst [vmem:[%s4 + $0x60] sm:$0xff] %v695
  %716 = vst [vmem:[%s4 + $0x68] sm:$0xff] %v696
  %717 = vst [vmem:[%s4 + $0x70] sm:$0xff] %v699
  %718 = vst [vmem:[%s4 + $0x78] sm:$0xff] %v700
  %s719 = scalar_lea.vmem %s4, 128
  %720 = vst [vmem:[%s719] sm:$0xff] %v673
  %721 = vst [vmem:[%s719 + $0x8] sm:$0xff] %v674
  %722 = vst [vmem:[%s719 + $0x10] sm:$0xff] %v677
  %723 = vst [vmem:[%s719 + $0x18] sm:$0xff] %v678
  %724 = vst [vmem:[%s719 + $0x20] sm:$0xff] %v681
  %725 = vst [vmem:[%s719 + $0x28] sm:$0xff] %v682
  %726 = vst [vmem:[%s719 + $0x30] sm:$0xff] %v685
  %727 = vst [vmem:[%s719 + $0x38] sm:$0xff] %v686
  %728 = vst [vmem:[%s719 + $0x40] sm:$0xff] %v689
  %729 = vst [vmem:[%s719 + $0x48] sm:$0xff] %v690
  %730 = vst [vmem:[%s719 + $0x50] sm:$0xff] %v693
  %731 = vst [vmem:[%s719 + $0x58] sm:$0xff] %v694
  %732 = vst [vmem:[%s719 + $0x60] sm:$0xff] %v697
  %733 = vst [vmem:[%s719 + $0x68] sm:$0xff] %v698
  %734 = vst [vmem:[%s719 + $0x70] sm:$0xff] %v701
  %735 = vst [vmem:[%s719 + $0x78] sm:$0xff] %v702
  // Predicated region
  $region18: #{feature_block.1} parent=0 // pred_check
    _
  $region19: #{feature_block.1} parent=0 // pred_check_branch
    %737 = sbr.rel (0) target = $region21
  $region20: #{feature_block.1} parent=0 // pred_region
    _
  $region21: #{feature_block.1} parent=0 // pred_fallthru
    _
  // Predicated region
  $region22: #{feature_block.1} parent=0 // pred_check
    _
  $region23: #{feature_block.1} parent=0 // pred_check_branch
    %739 = sbr.rel (0) target = $region25
  $region24: #{feature_block.1} parent=0 // pred_region
    _
  $region25: #{feature_block.1} parent=0 // pred_fallthru
    _

</llo_original>
